<compile_context>
chip_gen: v5e
topology: v5e:2x2
jax: 0.10.0
libtpu: 0.0.40
codegen_flags: <defaults>
</compile_context>

<pallas_src>
import functools

import jax
import jax.numpy as jnp
from jax.experimental import pallas as pl
from jax.experimental.pallas import tpu as pltpu


def _focal_pow(d, gamma):
    """(1 - p_t) ** gamma, avoiding the EUP pow path for integer gamma."""
    if gamma == 2.0:
        return d * d
    if gamma == 1.0:
        return d
    if gamma == 0.0:
        return jnp.ones_like(d)
    if float(gamma).is_integer() and gamma > 0.0:
        return jax.lax.integer_pow(d, int(gamma))
    # TODO(synk): non-integer gamma can see d slightly negative (p_t + smooth
    # can exceed 1); the PyTorch reference has the same behavior, so parity
    # is preserved rather than clamping here.
    return jnp.power(d, gamma)


def _focal_kernel(alpha_ref, logit_ref, target_ref, out_ref, *,
                  num_class, gamma, smooth, total_rows, tile_rows):
    """One (batch n, row-tile j) grid step.

    Block shapes (leading batch dim squeezed away via `None` block dims):
      alpha_ref  : (C, 128)      f32   lane-broadcast class weights
      logit_ref  : (C, TR, 128)  input dtype
      target_ref : (TR, 128)     int32
      out_ref    : (TR, 128)     f32   resident per-batch accumulator
    """
    j = pl.program_id(1)

    # Zero the resident accumulator at the start of each row sweep.
    @pl.when(j == 0)
    def _():
        out_ref[...] = jnp.zeros_like(out_ref)

    x = logit_ref[...].astype(jnp.float32)          # (C, TR, 128)
    tgt = target_ref[...]                           # (TR, 128) int32
    alpha_rows = alpha_ref[...]                     # (C, 128) f32

    # Column-wise max over the (small, static) class axis — unrolled so every
    # op runs on full (TR, 128) slabs / (8, 128) vregs.
    m = x[0]
    for c in range(1, num_class):
        m = jnp.maximum(m, x[c])

    # Softmax denominator + target-class gather + alpha gather via per-class
    # compares (no iota, no one-hot materialization, no softmax tensor).
    is_c = tgt == 0
    sum_e = jnp.exp(x[0] - m)
    x_t = jnp.where(is_c, x[0], -jnp.inf)
    a_w = jnp.where(is_c, alpha_rows[0], 0.0)
    for c in range(1, num_class):
        sum_e = sum_e + jnp.exp(x[c] - m)
        is_c = tgt == c
        x_t = jnp.where(is_c, x[c], x_t)
        a_w = jnp.where(is_c, alpha_rows[c], a_w)

    p_t = jnp.exp(x_t - m) / sum_e + smooth         # (TR, 128)
    logpt = jnp.log(p_t)
    loss = -a_w * _focal_pow(1.0 - p_t, gamma) * logpt

    rem_rows = total_rows % tile_rows
    if rem_rows == 0:
        # Every row-tile is fully in range: plain elementwise accumulate.
        out_ref[...] += loss
    else:
        last = pl.num_programs(1) - 1

        @pl.when(j < last)
        def _():
            out_ref[...] += loss

        @pl.when(j == last)
        def _():
            # Only the final row-tile contains out-of-range (garbage) rows;
            # mask them before they ever reach the accumulator.
            row = jax.lax.broadcasted_iota(jnp.int32, loss.shape, 0)
            out_ref[...] += jnp.where(row < rem_rows, loss, 0.0)


def _focal_sum_jax(logit_ncl, target_nl, alpha, gamma, smooth):
    """Pure-JAX focal-loss *sum* for the tiny (<128 column) remainder slab."""
    prob = jax.nn.softmax(logit_ncl.astype(jnp.float32), axis=1)
    p_t = jnp.take_along_axis(prob, target_nl[:, None, :], axis=1)[:, 0, :] + smooth
    logpt = jnp.log(p_t)
    a_w = alpha[target_nl]
    return jnp.sum(-a_w * _focal_pow(1.0 - p_t, gamma) * logpt)


def multi_focal_loss(logit, target, alpha, gamma=2.0, smooth=1e-4,
                     tile_cols=65536, vmem_budget_bytes=12 * 1024 * 1024):
    """Forward of MultiFocalLoss with reduction='mean'.

    logit : (N, C, H, W) (or any (N, C, ...) / (M, C)); target: matching
    integer labels; alpha: (C,) class weights.  Returns the scalar mean loss.
    """
    gamma = float(gamma)
    smooth = float(smooth)
    alpha_f32 = jnp.asarray(alpha, jnp.float32).reshape(-1)

    if logit.ndim > 2:
        N, C = int(logit.shape[0]), int(logit.shape[1])
        L = 1
        for d in logit.shape[2:]:
            L *= int(d)
        logit3d = logit.reshape(N, C, L)                      # free NCHW reshape
        tgt2d = target.reshape(N, L).astype(jnp.int32)
    else:
        # TODO(synk): the 2-D (M, C) path needs a real XLA transpose (one extra
        # HBM pass over the logits); feed (C, M)-major logits upstream to avoid it.
        M0, C = int(logit.shape[0]), int(logit.shape[1])
        N, L = 1, M0
        logit3d = logit.T.reshape(1, C, L)
        tgt2d = target.reshape(1, L).astype(jnp.int32)

    total = N * L
    R, rem = divmod(L, 128)

    main_sum = jnp.zeros((), jnp.float32)
    if R > 0:
        L_main = R * 128
        logit4d = logit3d[:, :, :L_main].reshape(N, C, R, 128)
        tgt3d = tgt2d[:, :L_main].reshape(N, R, 128)
        alpha2d = jnp.broadcast_to(alpha_f32.reshape(C, 1), (C, 128))

        # ---- VMEM-aware row-tile size (TR rows of 128 columns per block) ----
        itemsize = int(jnp.dtype(logit.dtype).itemsize)
        per_col_bytes = (2 * C * itemsize      # double-buffered logits block
                         + 2 * 4               # double-buffered target block
                         + 4                   # resident f32 accumulator block
                         + (C + 6) * 4)        # f32 temporaries (x, m, sum_e, ...)
        tr_budget = max(1, int(vmem_budget_bytes) // (per_col_bytes * 128))
        tr_target = max(1, int(tile_cols) // 128)
        if R <= 8:
            TR = R                              # full dim (satisfies (8,128) rule)
        else:
            TR = min(tr_target, tr_budget, R)
            if TR < R:
                TR = max(8, (TR // 8) * 8)      # sublane-aligned partial tile
        n_row_tiles = pl.cdiv(R, TR)

        est_block_bytes = per_col_bytes * 128 * TR
        vmem_limit = int(min(max(2 * est_block_bytes, 16 * 1024 * 1024),
                             32 * 1024 * 1024))

        kernel = functools.partial(
            _focal_kernel, num_class=C, gamma=gamma, smooth=smooth,
            total_rows=R, tile_rows=TR)

        cost = pl.CostEstimate(
            flops=int(N) * L_main * (6 * C + 12),
            transcendentals=int(N) * L_main * (C + 2),
            bytes_accessed=int(N) * (C * L_main * itemsize + L_main * 4
                                     + TR * 128 * 4) + C * 128 * 4,
        )

        partial_sums = pl.pallas_call(
            kernel,
            out_shape=jax.ShapeDtypeStruct((N, TR, 128), jnp.float32),
            grid_spec=pltpu.PrefetchScalarGridSpec(
                num_scalar_prefetch=0,
                grid=(N, n_row_tiles),
                in_specs=[
                    pl.BlockSpec((C, 128), lambda n, j: (0, 0)),                  # alpha
                    pl.BlockSpec((None, C, TR, 128), lambda n, j: (n, 0, j, 0)),  # logits
                    pl.BlockSpec((None, TR, 128), lambda n, j: (n, j, 0)),        # targets
                ],
                out_specs=pl.BlockSpec((None, TR, 128), lambda n, j: (n, 0, 0)),
            ),
            compiler_params=pltpu.CompilerParams(
                dimension_semantics=("parallel", "arbitrary"),
                vmem_limit_bytes=vmem_limit),
            cost_estimate=cost,
        )(alpha2d, logit4d, tgt3d)

        # Single tiny cross-lane reduction over the (N, TR, 128) partial sums.
        main_sum = jnp.sum(partial_sums)

    rem_sum = jnp.zeros((), jnp.float32)
    if rem > 0:
        # Tiny (<128 column) tail handled in plain JAX instead of padding.
        rem_sum = _focal_sum_jax(logit3d[:, :, R * 128:], tgt2d[:, R * 128:],
                                 alpha_f32, gamma, smooth)

    return (main_sum + rem_sum) / jnp.float32(total)


def _reference(logit, target, alpha, gamma=2.0, smooth=1e-4):
    N, C = logit.shape[:2]
    prob = jax.nn.softmax(logit, axis=1)
    prob = jnp.moveaxis(prob.reshape(N, C, -1), 1, 2).reshape(-1, C)
    t = target.reshape(-1)
    p_t = jnp.take_along_axis(prob, t[:, None], axis=1)[:, 0] + smooth
    logpt = jnp.log(p_t)
    a_w = alpha[t]
    loss = -a_w * jnp.power(1.0 - p_t, gamma) * logpt
    return jnp.mean(loss)


if __name__ == "__main__":
    num_class = 4
    N, C, H, W = 2, num_class, 16, 16

    key = jax.random.PRNGKey(0)
    k1, k2 = jax.random.split(key)
    logit = jax.random.normal(k1, (N, C, H, W), dtype=jnp.float32)
    target = jax.random.randint(k2, (N, H, W), 0, num_class, dtype=jnp.int32)

    # alpha default in the module: torch.ones(num_class) - 0.5
    alpha = jnp.ones((num_class,), dtype=jnp.float32) - 0.5

    loss = multi_focal_loss(logit, target, alpha, gamma=2.0)
    loss = jax.block_until_ready(loss)

    ref = _reference(logit, target, alpha, gamma=2.0)
    assert jnp.allclose(loss, ref, rtol=2e-5, atol=1e-6), (loss, ref)

    print("KERNEL_OK")
</pallas_src>

<mosaic_0001>
module attributes {stable_mosaic.version = 11 : i64} {
  func.func @_focal_kernel(%arg0: i32, %arg1: i32, %arg2: memref<4x128xf32, #tpu.memory_space<vmem>>, %arg3: memref<1x4x2x128xf32, #tpu.memory_space<vmem>>, %arg4: memref<1x2x128xi32, #tpu.memory_space<vmem>>, %arg5: memref<1x2x128xf32, #tpu.memory_space<vmem>>) attributes {dimension_semantics = [#tpu.dimension_semantics<parallel>, #tpu.dimension_semantics<arbitrary>], iteration_bounds = array<i64: 2, 1>, scalar_prefetch = 0 : i64, scratch_operands = 0 : i64, tpu.core_type = #tpu.core_type<tc>, window_params = [{pipeline_mode = #tpu.pipeline_mode<synchronous>, transform_indices = @transform_0, window_bounds = array<i64: 4, 128>}, {transform_indices = @transform_1, window_bounds = array<i64: 1, 4, 2, 128>}, {transform_indices = @transform_2, window_bounds = array<i64: 1, 2, 128>}, {transform_indices = @transform_3, window_bounds = array<i64: 1, 2, 128>}]} {
    %c0_i32 = arith.constant 0 : i32
    %0 = arith.cmpi eq, %arg1, %c0_i32 : i32
    %1 = arith.extui %0 : i1 to i32
    %c0_i32_0 = arith.constant 0 : i32
    %2 = arith.cmpi ne, %1, %c0_i32_0 : i32
    scf.if %2 {
      %cst_20 = arith.constant 0.000000e+00 : f32
      %99 = vector.broadcast %cst_20 : f32 to vector<2x128xf32>
      %c0_21 = arith.constant 0 : index
      %c0_22 = arith.constant 0 : index
      %c0_23 = arith.constant 0 : index
      %100 = vector.load %arg5[%c0_21, %c0_22, %c0_23] : memref<1x2x128xf32, #tpu.memory_space<vmem>>, vector<1x2x128xf32>
      %101 = vector.shape_cast %100 : vector<1x2x128xf32> to vector<2x128xf32>
      %102 = vector.shape_cast %99 : vector<2x128xf32> to vector<1x2x128xf32>
      tpu.vector_store %arg5[%c0_21, %c0_22, %c0_23], %102 {strides = array<i32>} : memref<1x2x128xf32, #tpu.memory_space<vmem>>, vector<1x2x128xf32>,
    } else {
    }
    %c0 = arith.constant 0 : index
    %c0_1 = arith.constant 0 : index
    %c0_2 = arith.constant 0 : index
    %c0_3 = arith.constant 0 : index
    %3 = vector.load %arg3[%c0, %c0_1, %c0_2, %c0_3] : memref<1x4x2x128xf32, #tpu.memory_space<vmem>>, vector<1x4x2x128xf32>
    %4 = vector.shape_cast %3 : vector<1x4x2x128xf32> to vector<4x2x128xf32>
    %c0_4 = arith.constant 0 : index
    %c0_5 = arith.constant 0 : index
    %c0_6 = arith.constant 0 : index
    %5 = vector.load %arg4[%c0_4, %c0_5, %c0_6] : memref<1x2x128xi32, #tpu.memory_space<vmem>>, vector<1x2x128xi32>
    %6 = vector.shape_cast %5 : vector<1x2x128xi32> to vector<2x128xi32>
    %c0_7 = arith.constant 0 : index
    %c0_8 = arith.constant 0 : index
    %7 = vector.load %arg2[%c0_7, %c0_8] : memref<4x128xf32, #tpu.memory_space<vmem>>, vector<4x128xf32>
    %8 = vector.extract_strided_slice %4 {offsets = [0, 0, 0], sizes = [1, 2, 128], strides = [1, 1, 1]} : vector<4x2x128xf32> to vector<1x2x128xf32>
    %9 = vector.shape_cast %8 : vector<1x2x128xf32> to vector<2x128xf32>
    %10 = vector.extract_strided_slice %4 {offsets = [1, 0, 0], sizes = [1, 2, 128], strides = [1, 1, 1]} : vector<4x2x128xf32> to vector<1x2x128xf32>
    %11 = vector.shape_cast %10 : vector<1x2x128xf32> to vector<2x128xf32>
    %12 = arith.maximumf %9, %11 : vector<2x128xf32>
    %13 = vector.extract_strided_slice %4 {offsets = [2, 0, 0], sizes = [1, 2, 128], strides = [1, 1, 1]} : vector<4x2x128xf32> to vector<1x2x128xf32>
    %14 = vector.shape_cast %13 : vector<1x2x128xf32> to vector<2x128xf32>
    %15 = arith.maximumf %12, %14 : vector<2x128xf32>
    %16 = vector.extract_strided_slice %4 {offsets = [3, 0, 0], sizes = [1, 2, 128], strides = [1, 1, 1]} : vector<4x2x128xf32> to vector<1x2x128xf32>
    %17 = vector.shape_cast %16 : vector<1x2x128xf32> to vector<2x128xf32>
    %18 = arith.maximumf %15, %17 : vector<2x128xf32>
    %c0_i32_9 = arith.constant 0 : i32
    %19 = vector.broadcast %c0_i32_9 : i32 to vector<2x128xi32>
    %20 = arith.cmpi eq, %6, %19 : vector<2x128xi32>
    %21 = vector.extract_strided_slice %4 {offsets = [0, 0, 0], sizes = [1, 2, 128], strides = [1, 1, 1]} : vector<4x2x128xf32> to vector<1x2x128xf32>
    %22 = vector.shape_cast %21 : vector<1x2x128xf32> to vector<2x128xf32>
    %23 = arith.subf %22, %18 : vector<2x128xf32>
    %24 = math.exp %23 : vector<2x128xf32>
    %25 = vector.extract_strided_slice %4 {offsets = [0, 0, 0], sizes = [1, 2, 128], strides = [1, 1, 1]} : vector<4x2x128xf32> to vector<1x2x128xf32>
    %26 = vector.shape_cast %25 : vector<1x2x128xf32> to vector<2x128xf32>
    %cst = arith.constant 0xFF800000 : f32
    %27 = vector.broadcast %cst : f32 to vector<2x128xf32>
    %28 = arith.select %20, %26, %27 : vector<2x128xi1>, vector<2x128xf32>
    %29 = vector.extract_strided_slice %7 {offsets = [0, 0], sizes = [1, 128], strides = [1, 1]} : vector<4x128xf32> to vector<1x128xf32>
    %30 = vector.shape_cast %29 : vector<1x128xf32> to vector<128xf32>
    %cst_10 = arith.constant 0.000000e+00 : f32
    %31 = vector.shape_cast %30 : vector<128xf32> to vector<1x128xf32>
    %32 = vector.broadcast %31 : vector<1x128xf32> to vector<2x128xf32>
    %33 = vector.broadcast %cst_10 : f32 to vector<2x128xf32>
    %34 = arith.select %20, %32, %33 : vector<2x128xi1>, vector<2x128xf32>
    %35 = vector.extract_strided_slice %4 {offsets = [1, 0, 0], sizes = [1, 2, 128], strides = [1, 1, 1]} : vector<4x2x128xf32> to vector<1x2x128xf32>
    %36 = vector.shape_cast %35 : vector<1x2x128xf32> to vector<2x128xf32>
    %37 = arith.subf %36, %18 : vector<2x128xf32>
    %38 = math.exp %37 : vector<2x128xf32>
    %39 = arith.addf %24, %38 : vector<2x128xf32>
    %c1_i32 = arith.constant 1 : i32
    %40 = vector.broadcast %c1_i32 : i32 to vector<2x128xi32>
    %41 = arith.cmpi eq, %6, %40 : vector<2x128xi32>
    %42 = vector.extract_strided_slice %4 {offsets = [1, 0, 0], sizes = [1, 2, 128], strides = [1, 1, 1]} : vector<4x2x128xf32> to vector<1x2x128xf32>
    %43 = vector.shape_cast %42 : vector<1x2x128xf32> to vector<2x128xf32>
    %44 = arith.select %41, %43, %28 : vector<2x128xi1>, vector<2x128xf32>
    %45 = vector.extract_strided_slice %7 {offsets = [1, 0], sizes = [1, 128], strides = [1, 1]} : vector<4x128xf32> to vector<1x128xf32>
    %46 = vector.shape_cast %45 : vector<1x128xf32> to vector<128xf32>
    %47 = vector.shape_cast %46 : vector<128xf32> to vector<1x128xf32>
    %48 = vector.broadcast %47 : vector<1x128xf32> to vector<2x128xf32>
    %49 = arith.select %41, %48, %34 : vector<2x128xi1>, vector<2x128xf32>
    %50 = vector.extract_strided_slice %4 {offsets = [2, 0, 0], sizes = [1, 2, 128], strides = [1, 1, 1]} : vector<4x2x128xf32> to vector<1x2x128xf32>
    %51 = vector.shape_cast %50 : vector<1x2x128xf32> to vector<2x128xf32>
    %52 = arith.subf %51, %18 : vector<2x128xf32>
    %53 = math.exp %52 : vector<2x128xf32>
    %54 = arith.addf %39, %53 : vector<2x128xf32>
    %c2_i32 = arith.constant 2 : i32
    %55 = vector.broadcast %c2_i32 : i32 to vector<2x128xi32>
    %56 = arith.cmpi eq, %6, %55 : vector<2x128xi32>
    %57 = vector.extract_strided_slice %4 {offsets = [2, 0, 0], sizes = [1, 2, 128], strides = [1, 1, 1]} : vector<4x2x128xf32> to vector<1x2x128xf32>
    %58 = vector.shape_cast %57 : vector<1x2x128xf32> to vector<2x128xf32>
    %59 = arith.select %56, %58, %44 : vector<2x128xi1>, vector<2x128xf32>
    %60 = vector.extract_strided_slice %7 {offsets = [2, 0], sizes = [1, 128], strides = [1, 1]} : vector<4x128xf32> to vector<1x128xf32>
    %61 = vector.shape_cast %60 : vector<1x128xf32> to vector<128xf32>
    %62 = vector.shape_cast %61 : vector<128xf32> to vector<1x128xf32>
    %63 = vector.broadcast %62 : vector<1x128xf32> to vector<2x128xf32>
    %64 = arith.select %56, %63, %49 : vector<2x128xi1>, vector<2x128xf32>
    %65 = vector.extract_strided_slice %4 {offsets = [3, 0, 0], sizes = [1, 2, 128], strides = [1, 1, 1]} : vector<4x2x128xf32> to vector<1x2x128xf32>
    %66 = vector.shape_cast %65 : vector<1x2x128xf32> to vector<2x128xf32>
    %67 = arith.subf %66, %18 : vector<2x128xf32>
    %68 = math.exp %67 : vector<2x128xf32>
    %69 = arith.addf %54, %68 : vector<2x128xf32>
    %c3_i32 = arith.constant 3 : i32
    %70 = vector.broadcast %c3_i32 : i32 to vector<2x128xi32>
    %71 = arith.cmpi eq, %6, %70 : vector<2x128xi32>
    %72 = vector.extract_strided_slice %4 {offsets = [3, 0, 0], sizes = [1, 2, 128], strides = [1, 1, 1]} : vector<4x2x128xf32> to vector<1x2x128xf32>
    %73 = vector.shape_cast %72 : vector<1x2x128xf32> to vector<2x128xf32>
    %74 = arith.select %71, %73, %59 : vector<2x128xi1>, vector<2x128xf32>
    %75 = vector.extract_strided_slice %7 {offsets = [3, 0], sizes = [1, 128], strides = [1, 1]} : vector<4x128xf32> to vector<1x128xf32>
    %76 = vector.shape_cast %75 : vector<1x128xf32> to vector<128xf32>
    %77 = vector.shape_cast %76 : vector<128xf32> to vector<1x128xf32>
    %78 = vector.broadcast %77 : vector<1x128xf32> to vector<2x128xf32>
    %79 = arith.select %71, %78, %64 : vector<2x128xi1>, vector<2x128xf32>
    %80 = arith.subf %74, %18 : vector<2x128xf32>
    %81 = math.exp %80 : vector<2x128xf32>
    %82 = arith.divf %81, %69 : vector<2x128xf32>
    %cst_11 = arith.constant 9.99999974E-5 : f32
    %83 = vector.broadcast %cst_11 : f32 to vector<2x128xf32>
    %84 = arith.addf %82, %83 : vector<2x128xf32>
    %85 = math.log %84 : vector<2x128xf32>
    %cst_12 = arith.constant 0.000000e+00 : f32
    %86 = vector.broadcast %cst_12 : f32 to vector<2x128xf32>
    %87 = arith.subf %86, %79 : vector<2x128xf32>
    %cst_13 = arith.constant 1.000000e+00 : f32
    %88 = vector.broadcast %cst_13 : f32 to vector<2x128xf32>
    %89 = arith.subf %88, %84 : vector<2x128xf32>
    %90 = arith.mulf %89, %89 : vector<2x128xf32>
    %91 = arith.mulf %87, %90 : vector<2x128xf32>
    %92 = arith.mulf %91, %85 : vector<2x128xf32>
    %c0_14 = arith.constant 0 : index
    %c0_15 = arith.constant 0 : index
    %c0_16 = arith.constant 0 : index
    %93 = vector.load %arg5[%c0_14, %c0_15, %c0_16] : memref<1x2x128xf32, #tpu.memory_space<vmem>>, vector<1x2x128xf32>
    %94 = vector.shape_cast %93 : vector<1x2x128xf32> to vector<2x128xf32>
    %95 = arith.addf %94, %92 : vector<2x128xf32>
    %c0_17 = arith.constant 0 : index
    %c0_18 = arith.constant 0 : index
    %c0_19 = arith.constant 0 : index
    %96 = vector.load %arg5[%c0_17, %c0_18, %c0_19] : memref<1x2x128xf32, #tpu.memory_space<vmem>>, vector<1x2x128xf32>
    %97 = vector.shape_cast %96 : vector<1x2x128xf32> to vector<2x128xf32>
    %98 = vector.shape_cast %95 : vector<2x128xf32> to vector<1x2x128xf32>
    tpu.vector_store %arg5[%c0_17, %c0_18, %c0_19], %98 {strides = array<i32>} : memref<1x2x128xf32, #tpu.memory_space<vmem>>, vector<1x2x128xf32>,
    return
  }
  func.func @transform_0(%arg0: i32, %arg1: i32) -> (i32, i32) {
    %c0_i32 = arith.constant 0 : i32
    %c0_i32_0 = arith.constant 0 : i32
    %c0_i32_1 = arith.constant 0 : i32
    return %c0_i32, %c0_i32_0 : i32, i32
  }
  func.func @transform_1(%arg0: i32, %arg1: i32) -> (i32, i32, i32, i32) {
    %c0_i32 = arith.constant 0 : i32
    %c0_i32_0 = arith.constant 0 : i32
    %c0_i32_1 = arith.constant 0 : i32
    return %arg0, %c0_i32, %arg1, %c0_i32_0 : i32, i32, i32, i32
  }
  func.func @transform_2(%arg0: i32, %arg1: i32) -> (i32, i32, i32) {
    %c0_i32 = arith.constant 0 : i32
    %c0_i32_0 = arith.constant 0 : i32
    return %arg0, %arg1, %c0_i32 : i32, i32, i32
  }
  func.func @transform_3(%arg0: i32, %arg1: i32) -> (i32, i32, i32) {
    %c0_i32 = arith.constant 0 : i32
    %c0_i32_0 = arith.constant 0 : i32
    %c0_i32_1 = arith.constant 0 : i32
    return %arg0, %c0_i32, %c0_i32_0 : i32, i32, i32
  }
}

</mosaic_0001>

<llo_original>
// kernel: tpu_custom_call.1
$region0: #{tpu_custom_call.1}
  #allocation0 [shape = 'u32[]', space=smem, size = 0x4, offset = 0x4, fixed_abs, tag = 'smem constant byte address 0x4 - core index']
  #allocation1 [shape = 'u32[72,128]{1,0:T(1,128)}', space=vmem, size = 0x9000, scoped, tag = 'internal scratch']
  %s0 = inlined_call_operand.hbm [shape: f32[4,128], index: 0, kind: input, shape index: {}]
  %s1 = inlined_call_operand.hbm [shape: f32[2,4,2,128], index: 1, kind: input, shape index: {}]
  %s2 = inlined_call_operand.hbm [shape: s32[2,2,128], index: 2, kind: input, shape index: {}]
  %s3 = inlined_call_operand.hbm [shape: f32[2,2,128], index: 3, kind: output, shape index: {}]
  %s4 = sld [smem:[#allocation0]]
  $region61: #{tpu_custom_call.1} parent=0
    _
  %s6 = ssub.s32 1, %s4
  %s7 = scalar_select 0, %s6, %s4
  $region1: #{tpu_custom_call.1} parent=0
    #allocation2 [shape = 'u8[2048]{0}', space=vmem, size = 0x800, scoped, tag = 'input window, operand 0, single buffered']
    #allocation3 [shape = 's32[2]{0}', space=sflag, size = 0x8, scoped, tag = 'scoped memory for tpu_custom_call.1']
    #allocation4 [shape = 's32[2]{0}', space=sflag, size = 0x8, scoped, tag = 'scoped memory for tpu_custom_call.1']
    #allocation5 [shape = 'u8[8192]{0}', space=vmem, size = 0x2000, scoped, tag = 'input window, operand 1']
    #allocation6 [shape = 's32[2]{0}', space=sflag, size = 0x8, scoped, tag = 'scoped memory for tpu_custom_call.1']
    #allocation7 [shape = 'u8[2048]{0}', space=vmem, size = 0x800, scoped, tag = 'input window, operand 2']
    #allocation8 [shape = 'u8[2048]{0}', space=vmem, size = 0x800, scoped, tag = 'output window, operand 0']
    %8 = vsyncpa [#allocation3], 0
    %9 = vsyncpa [#allocation6], 0
    %s10 = scalar_lea.sflag [#allocation6], 1
    %11 = vsyncpa %s10, 0
    %12 = vsyncpa [#allocation4], 0
    %s13 = scalar_lea.sflag [#allocation4], 1
    %14 = vsyncpa %s13, 0
    loop: start=0, step=1, limit=4
    $region2: #{tpu_custom_call.1} parent=1 // loop_pre_header
      _
    $region3: #{tpu_custom_call.1} parent=1 // loop_header
      %s16 = sphi 0, %s20
      %p17 = scmp.ge.s32.totalorder %s16, 4
      %s23 = sphi 0, %s35
      %s24 = sphi 0, %s31
      %s25 = sphi 0, %s23
      %s26 = sphi 0, %s24
      %s27 = sphi 0, %s25
      %s28 = sphi 0, %s26
      %s36 = sphi 0, %s36
      %s38 = sphi 0, %s36
      %s39 = sphi 0, %s38
      %s53 = sphi 0, %s39
      %s61 = sphi 0, %s63
      %s64 = sphi 0, %s61
      %s65 = sphi 0, %s64
      %s81 = sphi 0, %s65
      %s89 = sphi 0, %s91
      %s92 = sphi 0, %s89
      %s93 = sphi 0, %s92
      %s109 = sphi 0, %s93
      %s115 = sphi 0, %s117
      %s118 = sphi 0, %s115
      %s119 = sphi 0, %s118
      %s135 = sphi 0, %s119
    $region4: #{tpu_custom_call.1} parent=1 // loop_header_branch
      %19 = sbr.rel (%p17) target = $region8
    $region5: #{tpu_custom_call.1} parent=1 // loop_body
      %s21 = ssub.s32 %s16, 1
      %s22 = ssub.s32 %s16, 2
      %s29 = sadd.s32 1, %s24
      %p30 = scmp.ge.s32.totalorder %s29, 1
      %s31 = scalar_select %p30, 0, %s29
      %s32 = sadd.s32 1, %s23
      %s33 = scalar_select %p30, %s32, %s23
      %p34 = scmp.ge.s32.totalorder %s33, 2
      %s35 = scalar_select %p34, 0, %s33
      %s37 = sadd.s32 %s36, 1
      %p40 = scmp.eq.s32.totalorder %s16, 1
      %p41 = scmp.ne.s32.totalorder %s36, %s38
      %p42 = scmp.eq.s32.totalorder %s16, 0
      %p43 = por %p41, %p42
      %p44 = scmp.ne.s32.totalorder %s36, %s38
      %p45 = scmp.eq.s32.totalorder %s21, 1
      %p46 = por %p44, %p45
      %p47 = scmp.ne.s32.totalorder %s38, %s39
      %p48 = scmp.eq.s32.totalorder %s21, 0
      %p49 = por %p47, %p48
      %p50 = scmp.ne.s32.totalorder %s38, %s39
      %p51 = scmp.eq.s32.totalorder %s22, 1
      %p52 = por %p50, %p51
      %p54 = scmp.ne.s32.totalorder %s39, %s53
      %p55 = scmp.eq.s32.totalorder %s22, 0
      %p56 = por %p54, %p55
      %s57 = ssub.s32 %s23, %s35
      %s58 = ssub.s32 %s24, %s31
      %s59 = sor.u32 %s57, %s58
      %p60 = scmp.eq.s32.totalorder %s59, 0
      %s62 = sadd.s32 %s61, 1
      %s63 = scalar_select %p60, %s61, %s62
      %p66 = pneg %p60
      %p67 = scmp.eq.s32.totalorder %s16, 1
      %p68 = por %p66, %p67
      %p69 = scmp.ne.s32.totalorder %s61, %s64
      %p70 = scmp.eq.s32.totalorder %s16, 0
      %p71 = por %p69, %p70
      %p72 = scmp.ne.s32.totalorder %s61, %s64
      %p73 = scmp.eq.s32.totalorder %s21, 1
      %p74 = por %p72, %p73
      %p75 = scmp.ne.s32.totalorder %s64, %s65
      %p76 = scmp.eq.s32.totalorder %s21, 0
      %p77 = por %p75, %p76
      %p78 = scmp.ne.s32.totalorder %s64, %s65
      %p79 = scmp.eq.s32.totalorder %s22, 1
      %p80 = por %p78, %p79
      %p82 = scmp.ne.s32.totalorder %s65, %s81
      %p83 = scmp.eq.s32.totalorder %s22, 0
      %p84 = por %p82, %p83
      %s85 = ssub.s32 %s23, %s35
      %s86 = ssub.s32 %s24, %s31
      %s87 = sor.u32 %s85, %s86
      %p88 = scmp.eq.s32.totalorder %s87, 0
      %s90 = sadd.s32 %s89, 1
      %s91 = scalar_select %p88, %s89, %s90
      %p94 = pneg %p88
      %p95 = scmp.eq.s32.totalorder %s16, 1
      %p96 = por %p94, %p95
      %p97 = scmp.ne.s32.totalorder %s89, %s92
      %p98 = scmp.eq.s32.totalorder %s16, 0
      %p99 = por %p97, %p98
      %p100 = scmp.ne.s32.totalorder %s89, %s92
      %p101 = scmp.eq.s32.totalorder %s21, 1
      %p102 = por %p100, %p101
      %p103 = scmp.ne.s32.totalorder %s92, %s93
      %p104 = scmp.eq.s32.totalorder %s21, 0
      %p105 = por %p103, %p104
      %p106 = scmp.ne.s32.totalorder %s92, %s93
      %p107 = scmp.eq.s32.totalorder %s22, 1
      %p108 = por %p106, %p107
      %p110 = scmp.ne.s32.totalorder %s93, %s109
      %p111 = scmp.eq.s32.totalorder %s22, 0
      %p112 = por %p110, %p111
      %s113 = ssub.s32 %s23, %s35
      %p114 = scmp.eq.s32.totalorder %s113, 0
      %s116 = sadd.s32 %s115, 1
      %s117 = scalar_select %p114, %s115, %s116
      %p120 = pneg %p114
      %p121 = scmp.eq.s32.totalorder %s16, 1
      %p122 = por %p120, %p121
      %p123 = scmp.ne.s32.totalorder %s115, %s118
      %p124 = scmp.eq.s32.totalorder %s16, 0
      %p125 = por %p123, %p124
      %p126 = scmp.ne.s32.totalorder %s115, %s118
      %p127 = scmp.eq.s32.totalorder %s21, 1
      %p128 = por %p126, %p127
      %p129 = scmp.ne.s32.totalorder %s118, %s119
      %p130 = scmp.eq.s32.totalorder %s21, 0
      %p131 = por %p129, %p130
      %p132 = scmp.ne.s32.totalorder %s118, %s119
      %p133 = scmp.eq.s32.totalorder %s22, 1
      %p134 = por %p132, %p133
      %p136 = scmp.ne.s32.totalorder %s119, %s135
      %p137 = scmp.eq.s32.totalorder %s22, 0
      %p138 = por %p136, %p137
      %p139 = scmp.le.s32.totalorder 1, %s16
      %p140 = scmp.lt.s32.totalorder %s16, 3
      %p141 = pnand %p139, %p140
      %p142 = pneg %p141
      // Predicated region
      $region9: #{tpu_custom_call.1} parent=5 // pred_check
        _
      $region10: #{tpu_custom_call.1} parent=5 // pred_check_branch
        %144 = sbr.rel (%p141) target = $region12
      $region11: #{tpu_custom_call.1} parent=5 // pred_region
        %s145 = ssub.s32 %s16, 1
        // Predicated region
        $region13: #{tpu_custom_call.1} parent=11 // pred_check
          %p146 = pneg %p49
        $region14: #{tpu_custom_call.1} parent=11 // pred_check_branch
          %148 = sbr.rel (%p146) target = $region16
        $region15: #{tpu_custom_call.1} parent=11 // pred_region
          %150 = vsyncadd [#allocation3], 0
          %s152 = sshll.u32 %s0, 4
          %s153 = int_to_ptr.hbm [resolvable:$true] %s152
          %s154 = sshll.u32 [#allocation2], 4
          %s155 = int_to_ptr.vmem [resolvable:$true] %s154
          %157 = dma.hbm_to_vmem [thread:$0]  %s153, 64, %s155, [#allocation3]
        $region16: #{tpu_custom_call.1} parent=11 // pred_fallthru
          _
      $region12: #{tpu_custom_call.1} parent=5 // pred_fallthru
        _
      %p158 = scmp.lt.s32.totalorder %s16, 2
      // Predicated region
      $region17: #{tpu_custom_call.1} parent=5 // pred_check
        %p159 = pneg %p158
      $region18: #{tpu_custom_call.1} parent=5 // pred_check_branch
        %161 = sbr.rel (%p159) target = $region20
      $region19: #{tpu_custom_call.1} parent=5 // pred_region
        // Predicated region
        $region21: #{tpu_custom_call.1} parent=19 // pred_check
          %p162 = pneg %p71
        $region22: #{tpu_custom_call.1} parent=19 // pred_check_branch
          %164 = sbr.rel (%p162) target = $region24
        $region23: #{tpu_custom_call.1} parent=19 // pred_region
          %s165 = sand.u32 %s16, 1
          %s166 = scalar_lea.sflag [#allocation6], %s165
          %s167 = sand.u32 %s61, 1
          %s168 = smul.addr %s167, 8
          %s169 = scalar_lea.vmem [#allocation5], %s168
          %171 = vsyncadd %s166, 0
          %s172 = smul.addr %s23, 4
          %s173 = sadd.s32 %s24, %s172
          %s174 = smul.addr %s173, 2
          %s175 = scalar_lea.hbm %s1, %s174
          %s176 = sshll.u32 %s175, 4
          %s177 = int_to_ptr.hbm [resolvable:$true] %s176
          %s178 = sshll.u32 %s169, 4
          %s179 = int_to_ptr.vmem [resolvable:$true] %s178
          %184 = dma.hbm_to_vmem [thread:$0]  %s177, 128, %s179, %s166, 32, 32, 2
        $region24: #{tpu_custom_call.1} parent=19 // pred_fallthru
          _
        // Predicated region
        $region25: #{tpu_custom_call.1} parent=19 // pred_check
          %p185 = pneg %p99
        $region26: #{tpu_custom_call.1} parent=19 // pred_check_branch
          %187 = sbr.rel (%p185) target = $region28
        $region27: #{tpu_custom_call.1} parent=19 // pred_region
          %s188 = sand.u32 %s16, 1
          %s189 = scalar_lea.sflag [#allocation6], %s188
          %s190 = sand.u32 %s89, 1
          %s191 = smul.addr %s190, 2
          %s192 = scalar_lea.vmem [#allocation7], %s191
          %194 = vsyncadd %s189, 0
          %s195 = sadd.s32 %s24, %s23
          %s196 = smul.addr %s195, 2
          %s197 = scalar_lea.hbm %s2, %s196
          %s199 = sshll.u32 %s197, 4
          %s200 = int_to_ptr.hbm [resolvable:$true] %s199
          %s201 = sshll.u32 %s192, 4
          %s202 = int_to_ptr.vmem [resolvable:$true] %s201
          %204 = dma.hbm_to_vmem [thread:$0]  %s200, 32, %s202, %s189
        $region28: #{tpu_custom_call.1} parent=19 // pred_fallthru
          _
      $region20: #{tpu_custom_call.1} parent=5 // pred_fallthru
        _
      %p205 = scmp.le.s32.totalorder 1, %s16
      %p206 = scmp.lt.s32.totalorder %s16, 3
      %p207 = pnand %p205, %p206
      %p208 = pneg %p207
      // Predicated region
      $region29: #{tpu_custom_call.1} parent=5 // pred_check
        _
      $region30: #{tpu_custom_call.1} parent=5 // pred_check_branch
        %210 = sbr.rel (%p207) target = $region32
      $region31: #{tpu_custom_call.1} parent=5 // pred_region
        %s211 = ssub.s32 %s16, 1
        // Predicated region
        $region33: #{tpu_custom_call.1} parent=31 // pred_check
          %p212 = pneg %p49
        $region34: #{tpu_custom_call.1} parent=31 // pred_check_branch
          %214 = sbr.rel (%p212) target = $region36
        $region35: #{tpu_custom_call.1} parent=31 // pred_region
          %216 = dma.done [#allocation3], 64
        $region36: #{tpu_custom_call.1} parent=31 // pred_fallthru
          _
        %s217 = sand.u32 %s21, 1
        %s218 = scalar_lea.sflag [#allocation6], %s217
        %s219 = sand.u32 %s64, 1
        %s220 = smul.addr %s219, 8
        %s221 = scalar_lea.vmem [#allocation5], %s220
        // Predicated region
        $region37: #{tpu_custom_call.1} parent=31 // pred_check
          %p222 = pneg %p77
        $region38: #{tpu_custom_call.1} parent=31 // pred_check_branch
          %224 = sbr.rel (%p222) target = $region40
        $region39: #{tpu_custom_call.1} parent=31 // pred_region
          %226 = dma.done %s218, 128
        $region40: #{tpu_custom_call.1} parent=31 // pred_fallthru
          _
        %s227 = sand.u32 %s21, 1
        %s228 = scalar_lea.sflag [#allocation6], %s227
        %s229 = sand.u32 %s92, 1
        %s230 = smul.addr %s229, 2
        %s231 = scalar_lea.vmem [#allocation7], %s230
        // Predicated region
        $region41: #{tpu_custom_call.1} parent=31 // pred_check
          %p232 = pneg %p105
        $region42: #{tpu_custom_call.1} parent=31 // pred_check_branch
          %234 = sbr.rel (%p232) target = $region44
        $region43: #{tpu_custom_call.1} parent=31 // pred_region
          %236 = dma.done %s228, 32
        $region44: #{tpu_custom_call.1} parent=31 // pred_fallthru
          _
        %p237 = pneg %p49
        %p238 = pneg %p46
        %s239 = sand.u32 %s21, 1
        %s240 = scalar_lea.sflag [#allocation6], %s239
        %s241 = sand.u32 %s64, 1
        %s242 = smul.addr %s241, 8
        %s243 = scalar_lea.vmem [#allocation5], %s242
        %p244 = pneg %p77
        %p245 = pneg %p74
        %s246 = sand.u32 %s21, 1
        %s247 = scalar_lea.sflag [#allocation6], %s246
        %s248 = sand.u32 %s92, 1
        %s249 = smul.addr %s248, 2
        %s250 = scalar_lea.vmem [#allocation7], %s249
        %p251 = pneg %p105
        %p252 = pneg %p102
        %p253 = pneg %p131
        %p254 = pneg %p128
        %s255 = sand.u32 %s118, 1
        %s256 = scalar_lea.sflag [#allocation4], %s255
        %s257 = sand.u32 %s118, 1
        %s258 = smul.addr %s257, 2
        %s259 = scalar_lea.vmem [#allocation8], %s258
        %p260 = scmp.eq.s32.totalorder %s26, 0
        // Predicated region
        $region45: #{tpu_custom_call.1} parent=31 // pred_check
          %p261 = pneg %p260
        $region46: #{tpu_custom_call.1} parent=31 // pred_check_branch
          %263 = sbr.rel (%p261) target = $region48
        $region47: #{tpu_custom_call.1} parent=31 // pred_region
          %264 = vst [vmem:[%s259] sm:$0x3] 0.0
        $region48: #{tpu_custom_call.1} parent=31 // pred_fallthru
          _
        %v265 = vld [vmem:[%s221] sm:$0x3]
        %v266 = vld [vmem:[%s221 + $0x2] sm:$0x3]
        %v267 = vld [vmem:[%s221 + $0x4] sm:$0x3]
        %v268 = vld [vmem:[%s221 + $0x6] sm:$0x3]
        %v269 = vld [vmem:[%s231] sm:$0x3]
        %v270 = vld [vmem:[#allocation2] sm:$0xf]
        %v271 = vmax.f32 %v265, %v266
        %v272 = vmax.f32 %v271, %v267
        %v273 = vmax.f32 %v272, %v268
        %vm274 = vcmp.eq.s32.totalorder %v269, 0
        %v275 = vsub.f32 %v265, %v273
        %v276 = vmul.f32 %v275, 1.442695
        %v277 = vpow.pop %v276
        %v278 = vsel %vm274, %v265, -inf
        %v279 = vperm.slane %v270, 0
        %v280 = vsel %vm274, %v279, 0.0
        %v281 = vsub.f32 %v266, %v273
        %v282 = vmul.f32 %v281, 1.442695
        %v283 = vpow.pop %v282
        %v284 = vadd.f32 %v277, %v283
        %vm285 = vcmp.eq.s32.totalorder %v269, 1
        %v286 = vsel %vm285, %v266, %v278
        %v287 = vperm.slane %v270, 1
        %v288 = vsel %vm285, %v287, %v280
        %v289 = vsub.f32 %v267, %v273
        %v290 = vmul.f32 %v289, 1.442695
        %v291 = vpow.pop %v290
        %v292 = vadd.f32 %v284, %v291
        %vm293 = vcmp.eq.s32.totalorder %v269, 2
        %v294 = vsel %vm293, %v267, %v286
        %v295 = vperm.slane %v270, 2
        %v296 = vsel %vm293, %v295, %v288
        %v297 = vsub.f32 %v268, %v273
        %v298 = vmul.f32 %v297, 1.442695
        %v299 = vpow.pop %v298
        %v300 = vadd.f32 %v292, %v299
        %vm301 = vcmp.eq.s32.totalorder %v269, 3
        %v302 = vsel %vm301, %v268, %v294
        %v303 = vperm.slane %v270, 3
        %v304 = vsel %vm301, %v303, %v296
        %v305 = vsub.f32 %v302, %v273
        %v306 = vmul.f32 %v305, 1.442695
        %v307 = vpow.pop %v306
        %v308 = vrcp.pop %v300
        %v309 = vmul.f32 %v300, %v308
        %v310 = vsub.f32 1.0, %v309
        %v311 = vmul.f32 %v308, %v310
        %v312 = vadd.f32 %v308, %v311
        %vm313 = vweird.f32 %v300
        %vm314 = vweird.f32 %v308
        %vm315 = vmor %vm313, %vm314
        %v316 = vsel %vm315, %v308, %v312
        %v317 = vand.u32 2147483647, %v300
        %vm318 = vcmp.eq.f32.partialorder %v317, 8.507059e+37
        %v319 = vand.u32 %v300, 2147483648
        %v320 = vor.u32 1.1754944e-38, %v319
        %v321 = vsel %vm318, %v320, %v316
        %v322 = vmul.f32 %v307, %v321
        %v323 = vadd.f32 %v322, 0.0001
        %v324 = vlog2.pop %v323
        %v325 = vmul.f32 %v324, 0.6931472
        %v326 = vsub.f32 0.0, %v304
        %v327 = vsub.f32 1.0, %v323
        %v328 = vmul.f32 %v327, %v327
        %v329 = vmul.f32 %v326, %v328
        %v330 = vmul.f32 %v329, %v325
        %v331 = vld [vmem:[%s259] sm:$0x3]
        %v332 = vadd.f32 %v331, %v330
        %333 = vst [vmem:[%s259] sm:$0x3] %v332
        %s334 = sand.u32 %s118, 1
        %s335 = scalar_lea.sflag [#allocation4], %s334
        %s336 = sand.u32 %s118, 1
        %s337 = smul.addr %s336, 2
        %s338 = scalar_lea.vmem [#allocation8], %s337
        // Predicated region
        $region49: #{tpu_custom_call.1} parent=31 // pred_check
          %p339 = pneg %p128
        $region50: #{tpu_custom_call.1} parent=31 // pred_check_branch
          %341 = sbr.rel (%p339) target = $region52
        $region51: #{tpu_custom_call.1} parent=31 // pred_region
          %343 = vsyncadd %s335, 0
          %s344 = smul.addr %s25, 2
          %s345 = scalar_lea.hbm %s3, %s344
          %s347 = sshll.u32 %s338, 4
          %s348 = int_to_ptr.vmem [resolvable:$true] %s347
          %s349 = sshll.u32 %s345, 4
          %s350 = int_to_ptr.hbm [resolvable:$true] %s349
          %352 = dma.vmem_to_hbm [thread:$0]  %s348, 32, %s350, %s335
        $region52: #{tpu_custom_call.1} parent=31 // pred_fallthru
          _
      $region32: #{tpu_custom_call.1} parent=5 // pred_fallthru
        _
      %p353 = scmp.le.s32.totalorder 2, %s16
      // Predicated region
      $region53: #{tpu_custom_call.1} parent=5 // pred_check
        %p354 = pneg %p353
      $region54: #{tpu_custom_call.1} parent=5 // pred_check_branch
        %356 = sbr.rel (%p354) target = $region56
      $region55: #{tpu_custom_call.1} parent=5 // pred_region
        %s357 = ssub.s32 %s16, 2
        // Predicated region
        $region57: #{tpu_custom_call.1} parent=55 // pred_check
          %p358 = pneg %p134
        $region58: #{tpu_custom_call.1} parent=55 // pred_check_branch
          %360 = sbr.rel (%p358) target = $region60
        $region59: #{tpu_custom_call.1} parent=55 // pred_region
          %s361 = sand.u32 %s119, 1
          %s362 = scalar_lea.sflag [#allocation4], %s361
          %s363 = sand.u32 %s119, 1
          %s364 = smul.addr %s363, 2
          %s365 = scalar_lea.vmem [#allocation8], %s364
          %367 = dma.done %s362, 32
        $region60: #{tpu_custom_call.1} parent=55 // pred_fallthru
          _
      $region56: #{tpu_custom_call.1} parent=5 // pred_fallthru
        _
    $region6: #{tpu_custom_call.1} parent=1 // loop_footer
      %s20 = sadd.s32 1, %s16
    $region7: #{tpu_custom_call.1} parent=1 // loop_footer_branch
      %15 = sbr.rel target = $region3
    $region8: #{tpu_custom_call.1} parent=1 // loop_exit
      _
    %368 = vsyncpa [#allocation3], 1
    %s369 = scalar_lea.sflag [#allocation3], 1
    %370 = vsyncpa %s369, 1
    %371 = vsyncpa [#allocation6], 1
    %s372 = scalar_lea.sflag [#allocation6], 1
    %373 = vsyncpa %s372, 1
    %374 = vsyncpa [#allocation4], 1
    %s375 = scalar_lea.sflag [#allocation4], 1
    %376 = vsyncpa %s375, 1

</llo_original>
